<compile_context>
chip_gen: v6e
topology: v6e:2x2x1
jax: 0.10.0
libtpu: 0.0.40
codegen_flags: <defaults>
</compile_context>

<pallas_src>
import functools

import jax
import jax.numpy as jnp
import numpy as np
from jax import lax
from jax.experimental import pallas as pl
from jax.experimental.pallas import tpu as pltpu


# ----------------------- channel-weights transformer (plain JAX) -----------------------
# Tiny (c tokens, d^2 features): computed once per forward, outside the Pallas kernel,
# so it never sits on the per-tile critical path.

def _layernorm(x, g, b, eps=1e-5):
    mu = jnp.mean(x, axis=-1, keepdims=True)
    var = jnp.mean((x - mu) ** 2, axis=-1, keepdims=True)
    return (x - mu) * lax.rsqrt(var + eps) * g + b


def _channel_weight_tokens(pos, params, num_heads, dim_head):
    """pos (c, 3) -> tok (c, d*d).  Depth-1 pre-norm transformer; dropout = identity."""
    c = pos.shape[0]
    inner = num_heads * dim_head
    scale = dim_head ** -0.5

    # Conv2d(1, D, (1,3), bias=True) over the 3 position coords == pos @ W1^T + b1
    tok = pos @ params["w1t"] + params["b1"]                              # (c, D)

    # PreNorm -> MHSA -> residual
    h = _layernorm(tok, params["ln1_g"], params["ln1_b"])
    qkv = h @ params["qkv_w"]
    q, k, v = jnp.split(qkv, (inner, 2 * inner), axis=-1)
    q = q.reshape(c, num_heads, dim_head).transpose(1, 0, 2)              # (H, c, dh)
    k = k.reshape(c, num_heads, dim_head).transpose(1, 0, 2)
    v = v.reshape(c, num_heads, dim_head).transpose(1, 0, 2)
    att = jax.nn.softmax(jnp.einsum("hqd,hkd->hqk", q, k) * scale, axis=-1)
    o = jnp.einsum("hqk,hkd->hqd", att, v).transpose(1, 0, 2).reshape(c, inner)
    tok = tok + o @ params["out_w"] + params["out_b"]

    # PreNorm -> GELU MLP -> residual
    h2 = _layernorm(tok, params["ln2_g"], params["ln2_b"])
    f = jax.nn.gelu(h2 @ params["ff1_w"] + params["ff1_b"], approximate=False)
    tok = tok + f @ params["ff2_w"] + params["ff2_b"]
    return tok                                                            # (c, D)


# ----------------------------------- Pallas kernel -------------------------------------

def _conv_kernel(w_ref, x_ref, o_ref):
    """Dynamic Conv2d(d, d, (c,1)) on one (d*c, tile) slab of x.

    w_ref : (d, d*c)  resident f32 weight (cols ordered i*c+ch)
    x_ref : (d*c, tile) streamed f32 block of x (native layout, batch squeezed)
    o_ref : (d, tile)   output block
    Single MXU matmul, f32 accumulation, unmasked lane-dense stores (tile % 128 == 0
    or tile == full T).
    """
    o_ref[...] = jnp.dot(w_ref[...], x_ref[...],
                         preferred_element_type=jnp.float32)


def _pick_tile(t):
    """Largest lane tile (<=8192, multiple of 128) dividing T; else pad or full-extent.

    Returns (tile, pad).  VMEM per step stays tiny (d*c rows), so even the largest
    candidate is a couple of MiB double-buffered: safe on v5e (16 MiB scoped),
    v6e (32 MiB) and v7x (32 MiB scoped / 64 MiB phys).
    """
    for cand in (8192, 4096, 2048, 1024, 512, 256, 128):
        if t % cand == 0:
            return cand, 0
    if t <= 2048:
        return t, 0                      # single full-extent block along T is legal
    tile = 2048
    return tile, (-t) % tile             # pad T up to a multiple of the tile


# ----------------------------------- full forward --------------------------------------

def channel_agnostic_transformer_forward(x, channel_positions, params,
                                          num_heads, dim_head):
    b, d, c, t = x.shape
    pos = channel_positions[0]                       # module: [0:1] then [0] -> (c, 3)

    # (1) conv weight computed ONCE (hoisted out of the kernel).
    #     conv_weights[o, i, ch] = tok[ch, o*d + i]  ->  (d, d*c) with cols = i*c + ch
    tok = _channel_weight_tokens(pos, params, num_heads, dim_head)        # (c, d*d)
    w2 = jnp.transpose(tok).reshape(d, d, c).reshape(d, d * c)            # f32, ~d*d*c*4 B

    # (2) x stays in its native layout; merging adjacent (d, c) dims is free.
    x2 = x.reshape(b, d * c, t)

    tile, pad = _pick_tile(t)
    if pad:
        x2 = jnp.pad(x2, ((0, 0), (0, 0), (0, pad)))
    t_pad = t + pad
    grid = (b, t_pad // tile)            # B >= 2 keeps >=2 parallel steps for v7x megacore

    cost = pl.CostEstimate(
        flops=2 * d * d * c * b * t_pad,
        transcendentals=0,
        bytes_accessed=4 * (b * d * c * t_pad + b * d * t_pad + d * d * c))

    out = pl.pallas_call(
        _conv_kernel,
        out_shape=jax.ShapeDtypeStruct((b, d, t_pad), jnp.float32),
        grid=grid,
        in_specs=[
            pl.BlockSpec((d, d * c), lambda bi, ti: (0, 0)),              # resident weight
            pl.BlockSpec((None, d * c, tile), lambda bi, ti: (bi, 0, ti)),  # streamed x
        ],
        out_specs=pl.BlockSpec((None, d, tile), lambda bi, ti: (bi, 0, ti)),
        compiler_params=pltpu.CompilerParams(
            dimension_semantics=("parallel", "parallel")),
        cost_estimate=cost,
    )(w2, x2)

    if pad:
        out = out[:, :, :t]
    # (B, d, T) -> (B, d, 1, T): metadata-only reshape.
    return out.reshape(b, d, 1, t)


# ----------------------------------- parameter setup -----------------------------------

def init_params(key, token_embed_dim, num_heads,
                dim_head_factor=1.0, feedforward_mlp_dim_factor=2):
    D = token_embed_dim ** 2                       # conv_weight_dim
    dim_head = int(dim_head_factor * D)
    inner = num_heads * dim_head
    H = int(feedforward_mlp_dim_factor * D)        # feedforward_mlp_dim
    ks = jax.random.split(key, 8)
    s = 0.1
    params = dict(
        w1t=s * jax.random.normal(ks[0], (3, D), jnp.float32),  # Conv2d(1,D,(1,3)).weight^T
        b1=s * jax.random.normal(ks[1], (1, D), jnp.float32),
        ln1_g=jnp.ones((1, D), jnp.float32),
        ln1_b=jnp.zeros((1, D), jnp.float32),
        qkv_w=s * jax.random.normal(ks[2], (D, 3 * inner), jnp.float32),
        out_w=s * jax.random.normal(ks[3], (inner, D), jnp.float32),
        out_b=s * jax.random.normal(ks[4], (1, D), jnp.float32),
        ln2_g=jnp.ones((1, D), jnp.float32),
        ln2_b=jnp.zeros((1, D), jnp.float32),
        ff1_w=s * jax.random.normal(ks[5], (D, H), jnp.float32),
        ff1_b=s * jax.random.normal(ks[6], (1, H), jnp.float32),
        ff2_w=s * jax.random.normal(ks[7], (H, D), jnp.float32),
        ff2_b=jnp.zeros((1, D), jnp.float32),
    )
    return params, dim_head


# ---------------------------------- pure-JAX reference ---------------------------------

def reference_forward(x, channel_positions, params, num_heads, dim_head):
    b, d, c, t = x.shape
    pos = channel_positions[0]
    tok = _channel_weight_tokens(pos, params, num_heads, dim_head)        # (c, d*d)
    # conv_weights[o, i, ch] = tok[ch, o*d + i]
    w = jnp.transpose(tok).reshape(d, d, c)
    out = jnp.einsum("oic,bict->bot", w, x, precision=lax.Precision.HIGHEST)
    return out.reshape(b, d, 1, t)


# ---------------------------------------- main ------------------------------------------

if __name__ == "__main__":
    B, TOKEN_EMBED_DIM, C, T = 2, 4, 8, 1024      # x: (B, d, c, t)
    NUM_HEADS = 2                                  # module defaults: num_heads=2, depth=1

    key = jax.random.PRNGKey(0)
    kx, kp, kw = jax.random.split(key, 3)
    x = jax.random.normal(kx, (B, TOKEN_EMBED_DIM, C, T), jnp.float32)
    channel_positions = jax.random.normal(kp, (B, C, 3), jnp.float32)

    params, dim_head = init_params(kw, TOKEN_EMBED_DIM, NUM_HEADS)

    cp = channel_positions[0:1]                    # module takes channel_positions[0:1]
    fwd = jax.jit(functools.partial(channel_agnostic_transformer_forward,
                                    num_heads=NUM_HEADS, dim_head=dim_head))
    out = jax.block_until_ready(fwd(x, cp, params))

    assert out.shape == (B, TOKEN_EMBED_DIM, 1, T), out.shape
    assert bool(jnp.all(jnp.isfinite(out)))

    ref = reference_forward(x, cp, params, NUM_HEADS, dim_head)
    np.testing.assert_allclose(np.asarray(out), np.asarray(ref), rtol=2e-2, atol=2e-2)

    print("KERNEL_OK")
</pallas_src>

<mosaic_0001>
module attributes {stable_mosaic.version = 11 : i64} {
  func.func @_conv_kernel(%arg0: i32, %arg1: i32, %arg2: memref<4x32xf32, #tpu.memory_space<vmem>>, %arg3: memref<1x32x1024xf32, #tpu.memory_space<vmem>>, %arg4: memref<1x4x1024xf32, #tpu.memory_space<vmem>>) attributes {dimension_semantics = [#tpu.dimension_semantics<parallel>, #tpu.dimension_semantics<parallel>], iteration_bounds = array<i64: 2, 1>, scalar_prefetch = 0 : i64, scratch_operands = 0 : i64, tpu.core_type = #tpu.core_type<tc>, window_params = [{pipeline_mode = #tpu.pipeline_mode<synchronous>, transform_indices = @transform_0, window_bounds = array<i64: 4, 32>}, {transform_indices = @transform_1, window_bounds = array<i64: 1, 32, 1024>}, {transform_indices = @transform_2, window_bounds = array<i64: 1, 4, 1024>}]} {
    %c0 = arith.constant 0 : index
    %c0_0 = arith.constant 0 : index
    %0 = vector.load %arg2[%c0, %c0_0] : memref<4x32xf32, #tpu.memory_space<vmem>>, vector<4x32xf32>
    %c0_1 = arith.constant 0 : index
    %c0_2 = arith.constant 0 : index
    %c0_3 = arith.constant 0 : index
    %1 = vector.load %arg3[%c0_1, %c0_2, %c0_3] : memref<1x32x1024xf32, #tpu.memory_space<vmem>>, vector<1x32x1024xf32>
    %2 = vector.shape_cast %1 : vector<1x32x1024xf32> to vector<32x1024xf32>
    %cst = arith.constant dense<0.000000e+00> : vector<4x1024xf32>
    %3 = tpu.matmul %0, %2, %cst {dimension_numbers = #tpu.dot_dimension_numbers<[1], [0], [0], [1], [0, 0, 1, 1], [], []>} : vector<4x32xf32>, vector<32x1024xf32>, vector<4x1024xf32> -> vector<4x1024xf32>
    %c0_4 = arith.constant 0 : index
    %c0_5 = arith.constant 0 : index
    %c0_6 = arith.constant 0 : index
    %4 = vector.load %arg4[%c0_4, %c0_5, %c0_6] : memref<1x4x1024xf32, #tpu.memory_space<vmem>>, vector<1x4x1024xf32>
    %5 = vector.shape_cast %4 : vector<1x4x1024xf32> to vector<4x1024xf32>
    %6 = vector.shape_cast %3 : vector<4x1024xf32> to vector<1x4x1024xf32>
    tpu.vector_store %arg4[%c0_4, %c0_5, %c0_6], %6 {strides = array<i32>} : memref<1x4x1024xf32, #tpu.memory_space<vmem>>, vector<1x4x1024xf32>,
    return
  }
  func.func @transform_0(%arg0: i32, %arg1: i32) -> (i32, i32) {
    %c0_i32 = arith.constant 0 : i32
    %c0_i32_0 = arith.constant 0 : i32
    %c0_i32_1 = arith.constant 0 : i32
    return %c0_i32, %c0_i32_0 : i32, i32
  }
  func.func @transform_1(%arg0: i32, %arg1: i32) -> (i32, i32, i32) {
    %c0_i32 = arith.constant 0 : i32
    %c0_i32_0 = arith.constant 0 : i32
    return %arg0, %c0_i32, %arg1 : i32, i32, i32
  }
  func.func @transform_2(%arg0: i32, %arg1: i32) -> (i32, i32, i32) {
    %c0_i32 = arith.constant 0 : i32
    %c0_i32_0 = arith.constant 0 : i32
    return %arg0, %c0_i32, %arg1 : i32, i32, i32
  }
}

</mosaic_0001>

<llo_original>
// kernel: channel_agnostic_transformer_forward.1
$region0: #{channel_agnostic_transformer_forward.1}
  #allocation0 [shape = 'u32[]', space=smem, size = 0x4, offset = 0x4, fixed_abs, tag = 'smem constant byte address 0x4 - core index']
  #allocation1 [shape = 'u32[144,128]{1,0:T(1,128)}', space=vmem, size = 0x12000, scoped, tag = 'internal scratch']
  %s0 = inlined_call_operand.vmem [shape: f32[4,32], index: 0, kind: input, shape index: {}]
  %s1 = inlined_call_operand.vmem [shape: f32[2,32,1024], index: 1, kind: input, shape index: {}]
  %s2 = inlined_call_operand.vmem [shape: f32[2,4,1024], index: 2, kind: output, shape index: {}]
  %s3 = sld [smem:[#allocation0]]
  $region41: #{channel_agnostic_transformer_forward.1} parent=0
    _
  %s5 = ssub.s32 1, %s3
  %s6 = scalar_select 0, %s5, %s3
  loop: start=0, step=1, limit=4
  $region2: #{channel_agnostic_transformer_forward.1} parent=0 // loop_pre_header
    _
  $region3: #{channel_agnostic_transformer_forward.1} parent=0 // loop_header
    %s8 = sphi 0, %s12
    %p9 = scmp.ge.s32.totalorder %s8, 4
    %s15 = sphi 0, %s27
    %s16 = sphi 0, %s23
    %s17 = sphi 0, %s15
    %s18 = sphi 0, %s16
    %s19 = sphi 0, %s17
    %s20 = sphi 0, %s18
    %s28 = sphi 0, %s28
    %s30 = sphi 0, %s28
    %s31 = sphi 0, %s30
    %s45 = sphi 0, %s31
    %s53 = sphi 0, %s55
    %s56 = sphi 0, %s53
    %s57 = sphi 0, %s56
    %s73 = sphi 0, %s57
    %s81 = sphi 0, %s83
    %s84 = sphi 0, %s81
    %s85 = sphi 0, %s84
    %s101 = sphi 0, %s85
  $region4: #{channel_agnostic_transformer_forward.1} parent=0 // loop_header_branch
    %11 = sbr.rel (%p9) target = $region8
  $region5: #{channel_agnostic_transformer_forward.1} parent=0 // loop_body
    %s13 = ssub.s32 %s8, 1
    %s14 = ssub.s32 %s8, 2
    %s21 = sadd.s32 1, %s16
    %p22 = scmp.ge.s32.totalorder %s21, 1
    %s23 = scalar_select %p22, 0, %s21
    %s24 = sadd.s32 1, %s15
    %s25 = scalar_select %p22, %s24, %s15
    %p26 = scmp.ge.s32.totalorder %s25, 2
    %s27 = scalar_select %p26, 0, %s25
    %s29 = sadd.s32 %s28, 1
    %p32 = scmp.eq.s32.totalorder %s8, 1
    %p33 = scmp.ne.s32.totalorder %s28, %s30
    %p34 = scmp.eq.s32.totalorder %s8, 0
    %p35 = por %p33, %p34
    %p36 = scmp.ne.s32.totalorder %s28, %s30
    %p37 = scmp.eq.s32.totalorder %s13, 1
    %p38 = por %p36, %p37
    %p39 = scmp.ne.s32.totalorder %s30, %s31
    %p40 = scmp.eq.s32.totalorder %s13, 0
    %p41 = por %p39, %p40
    %p42 = scmp.ne.s32.totalorder %s30, %s31
    %p43 = scmp.eq.s32.totalorder %s14, 1
    %p44 = por %p42, %p43
    %p46 = scmp.ne.s32.totalorder %s31, %s45
    %p47 = scmp.eq.s32.totalorder %s14, 0
    %p48 = por %p46, %p47
    %s49 = ssub.s32 %s15, %s27
    %s50 = ssub.s32 %s16, %s23
    %s51 = sor.u32 %s49, %s50
    %p52 = scmp.eq.s32.totalorder %s51, 0
    %s54 = sadd.s32 %s53, 1
    %s55 = scalar_select %p52, %s53, %s54
    %p58 = pneg %p52
    %p59 = scmp.eq.s32.totalorder %s8, 1
    %p60 = por %p58, %p59
    %p61 = scmp.ne.s32.totalorder %s53, %s56
    %p62 = scmp.eq.s32.totalorder %s8, 0
    %p63 = por %p61, %p62
    %p64 = scmp.ne.s32.totalorder %s53, %s56
    %p65 = scmp.eq.s32.totalorder %s13, 1
    %p66 = por %p64, %p65
    %p67 = scmp.ne.s32.totalorder %s56, %s57
    %p68 = scmp.eq.s32.totalorder %s13, 0
    %p69 = por %p67, %p68
    %p70 = scmp.ne.s32.totalorder %s56, %s57
    %p71 = scmp.eq.s32.totalorder %s14, 1
    %p72 = por %p70, %p71
    %p74 = scmp.ne.s32.totalorder %s57, %s73
    %p75 = scmp.eq.s32.totalorder %s14, 0
    %p76 = por %p74, %p75
    %s77 = ssub.s32 %s15, %s27
    %s78 = ssub.s32 %s16, %s23
    %s79 = sor.u32 %s77, %s78
    %p80 = scmp.eq.s32.totalorder %s79, 0
    %s82 = sadd.s32 %s81, 1
    %s83 = scalar_select %p80, %s81, %s82
    %p86 = pneg %p80
    %p87 = scmp.eq.s32.totalorder %s8, 1
    %p88 = por %p86, %p87
    %p89 = scmp.ne.s32.totalorder %s81, %s84
    %p90 = scmp.eq.s32.totalorder %s8, 0
    %p91 = por %p89, %p90
    %p92 = scmp.ne.s32.totalorder %s81, %s84
    %p93 = scmp.eq.s32.totalorder %s13, 1
    %p94 = por %p92, %p93
    %p95 = scmp.ne.s32.totalorder %s84, %s85
    %p96 = scmp.eq.s32.totalorder %s13, 0
    %p97 = por %p95, %p96
    %p98 = scmp.ne.s32.totalorder %s84, %s85
    %p99 = scmp.eq.s32.totalorder %s14, 1
    %p100 = por %p98, %p99
    %p102 = scmp.ne.s32.totalorder %s85, %s101
    %p103 = scmp.eq.s32.totalorder %s14, 0
    %p104 = por %p102, %p103
    %p105 = scmp.le.s32.totalorder 1, %s8
    %p106 = scmp.lt.s32.totalorder %s8, 3
    %p107 = pnand %p105, %p106
    %p108 = pneg %p107
    // Predicated region
    $region9: #{channel_agnostic_transformer_forward.1} parent=5 // pred_check
      _
    $region10: #{channel_agnostic_transformer_forward.1} parent=5 // pred_check_branch
      %110 = sbr.rel (%p107) target = $region12
    $region11: #{channel_agnostic_transformer_forward.1} parent=5 // pred_region
      %s111 = ssub.s32 %s8, 1
      // Predicated region
      $region13: #{channel_agnostic_transformer_forward.1} parent=11 // pred_check
        %p112 = pneg %p41
      $region14: #{channel_agnostic_transformer_forward.1} parent=11 // pred_check_branch
        %114 = sbr.rel (%p112) target = $region16
      $region15: #{channel_agnostic_transformer_forward.1} parent=11 // pred_region
        _
      $region16: #{channel_agnostic_transformer_forward.1} parent=11 // pred_fallthru
        _
    $region12: #{channel_agnostic_transformer_forward.1} parent=5 // pred_fallthru
      _
    %p115 = scmp.lt.s32.totalorder %s8, 2
    // Predicated region
    $region17: #{channel_agnostic_transformer_forward.1} parent=5 // pred_check
      %p116 = pneg %p115
    $region18: #{channel_agnostic_transformer_forward.1} parent=5 // pred_check_branch
      %118 = sbr.rel (%p116) target = $region20
    $region19: #{channel_agnostic_transformer_forward.1} parent=5 // pred_region
      // Predicated region
      $region21: #{channel_agnostic_transformer_forward.1} parent=19 // pred_check
        %p119 = pneg %p63
      $region22: #{channel_agnostic_transformer_forward.1} parent=19 // pred_check_branch
        %121 = sbr.rel (%p119) target = $region24
      $region23: #{channel_agnostic_transformer_forward.1} parent=19 // pred_region
        %s122 = smul.u32 8, %s16
        %p123 = scmp.lt.s32.totalorder %s15, 1
        %s124 = scalar_select %p123, %s15, 1
        %p125 = scmp.lt.s32.totalorder %s122, 7
        %s126 = scalar_select %p125, %s122, 7
        %s127 = smul.addr %s124, 32
        %s128 = sadd.s32 %s126, %s127
        %s129 = smul.addr %s128, 8
        %s130 = scalar_lea.vmem %s1, %s129
        %s131 = smul.u32 8, %s16
      $region24: #{channel_agnostic_transformer_forward.1} parent=19 // pred_fallthru
        _
    $region20: #{channel_agnostic_transformer_forward.1} parent=5 // pred_fallthru
      _
    %p132 = scmp.le.s32.totalorder 1, %s8
    %p133 = scmp.lt.s32.totalorder %s8, 3
    %p134 = pnand %p132, %p133
    %p135 = pneg %p134
    // Predicated region
    $region25: #{channel_agnostic_transformer_forward.1} parent=5 // pred_check
      _
    $region26: #{channel_agnostic_transformer_forward.1} parent=5 // pred_check_branch
      %137 = sbr.rel (%p134) target = $region28
    $region27: #{channel_agnostic_transformer_forward.1} parent=5 // pred_region
      %s138 = ssub.s32 %s8, 1
      %p139 = pneg %p41
      %p140 = pneg %p38
      %s141 = smul.u32 8, %s18
      %p142 = scmp.lt.s32.totalorder %s17, 1
      %s143 = scalar_select %p142, %s17, 1
      %p144 = scmp.lt.s32.totalorder %s141, 7
      %s145 = scalar_select %p144, %s141, 7
      %s146 = smul.addr %s143, 32
      %s147 = sadd.s32 %s145, %s146
      %s148 = smul.addr %s147, 8
      %s149 = scalar_lea.vmem %s1, %s148
      %p150 = pneg %p69
      %p151 = pneg %p66
      %p152 = pneg %p97
      %p153 = pneg %p94
      %s154 = smul.u32 8, %s18
      %p155 = scmp.lt.s32.totalorder %s17, 1
      %s156 = scalar_select %p155, %s17, 1
      %p157 = scmp.lt.s32.totalorder %s154, 7
      %s158 = scalar_select %p157, %s154, 7
      %s159 = smul.addr %s156, 8
      %s160 = sadd.s32 %s158, %s159
      %s161 = smul.addr %s160, 4
      %s162 = scalar_lea.vmem %s2, %s161
      %s163 = smul.u32 8, %s18
      %p164 = scmp.lt.s32.totalorder %s17, 1
      %s165 = scalar_select %p164, %s17, 1
      %p166 = scmp.lt.s32.totalorder %s163, 7
      %s167 = scalar_select %p166, %s163, 7
      %s168 = smul.addr %s165, 32
      %s169 = sadd.s32 %s167, %s168
      %s170 = smul.addr %s169, 8
      %s171 = scalar_lea.vmem %s1, %s170
      %s172 = smul.u32 8, %s18
      %s173 = smul.u32 8, %s18
      %p174 = scmp.lt.s32.totalorder %s17, 1
      %s175 = scalar_select %p174, %s17, 1
      %p176 = scmp.lt.s32.totalorder %s173, 7
      %s177 = scalar_select %p176, %s173, 7
      %s178 = smul.addr %s175, 8
      %s179 = sadd.s32 %s177, %s178
      %s180 = smul.addr %s179, 4
      %s181 = scalar_lea.vmem %s2, %s180
      %s182 = smul.u32 8, %s18
      %v183 = vld [vmem:[%s0] sm:$0xf]
      %v184 = vld [vmem:[%s171] sm:$0xff]
      %v185 = vld [vmem:[%s171 + $0x8] sm:$0xff]
      %v186 = vld [vmem:[%s171 + $0x10] sm:$0xff]
      %v187 = vld [vmem:[%s171 + $0x18] sm:$0xff]
      %v188 = vld [vmem:[%s171 + $0x20] sm:$0xff]
      %v189 = vld [vmem:[%s171 + $0x28] sm:$0xff]
      %v190 = vld [vmem:[%s171 + $0x30] sm:$0xff]
      %v191 = vld [vmem:[%s171 + $0x38] sm:$0xff]
      %v192 = vld [vmem:[%s171 + $0x40] sm:$0xff]
      %v193 = vld [vmem:[%s171 + $0x48] sm:$0xff]
      %v194 = vld [vmem:[%s171 + $0x50] sm:$0xff]
      %v195 = vld [vmem:[%s171 + $0x58] sm:$0xff]
      %v196 = vld [vmem:[%s171 + $0x60] sm:$0xff]
      %v197 = vld [vmem:[%s171 + $0x68] sm:$0xff]
      %v198 = vld [vmem:[%s171 + $0x70] sm:$0xff]
      %v199 = vld [vmem:[%s171 + $0x78] sm:$0xff]
      %v200 = vld [vmem:[%s171 + $0x80] sm:$0xff]
      %v201 = vld [vmem:[%s171 + $0x88] sm:$0xff]
      %v202 = vld [vmem:[%s171 + $0x90] sm:$0xff]
      %v203 = vld [vmem:[%s171 + $0x98] sm:$0xff]
      %v204 = vld [vmem:[%s171 + $0xa0] sm:$0xff]
      %v205 = vld [vmem:[%s171 + $0xa8] sm:$0xff]
      %v206 = vld [vmem:[%s171 + $0xb0] sm:$0xff]
      %v207 = vld [vmem:[%s171 + $0xb8] sm:$0xff]
      %v208 = vld [vmem:[%s171 + $0xc0] sm:$0xff]
      %v209 = vld [vmem:[%s171 + $0xc8] sm:$0xff]
      %v210 = vld [vmem:[%s171 + $0xd0] sm:$0xff]
      %v211 = vld [vmem:[%s171 + $0xd8] sm:$0xff]
      %v212 = vld [vmem:[%s171 + $0xe0] sm:$0xff]
      %v213 = vld [vmem:[%s171 + $0xe8] sm:$0xff]
      %v214 = vld [vmem:[%s171 + $0xf0] sm:$0xff]
      %v215 = vld [vmem:[%s171 + $0xf8] sm:$0xff]
      %vm216 = vcmask 261120
      %v218 = vsel %vm216, %v183, 0
      %220 = vmatprep.subr.mxu0 0.0
      %221 = vmatpush1.msra.mxu0 0.0
      %222 = vmatprep.subr.mxu0 0.0
      %223 = vmatpush1.msra.mxu0 0.0
      %224 = vmatprep.subr.mxu0 0.0
      %225 = vmatpush1.msra.mxu0 0.0
      %226 = vmatprep.subr.mxu0 0.0
      %227 = vmatpush1.msra.mxu0 0.0
      %228 = vmatprep.subr.mxu0 0.0
      %229 = vmatpush1.msra.mxu0 0.0
      %230 = vmatprep.subr.mxu0 0.0
      %231 = vmatpush1.msra.mxu0 0.0
      %232 = vmatprep.subr.mxu0 0.0
      %233 = vmatpush1.msra.mxu0 0.0
      %234 = vmatprep.subr.mxu0 0.0
      %235 = vmatpush1.msra.mxu0 0.0
      %236 = vmatprep.subr.mxu0 0.0
      %237 = vmatpush1.msra.mxu0 0.0
      %238 = vmatprep.subr.mxu0 0.0
      %239 = vmatpush1.msra.mxu0 0.0
      %240 = vmatprep.subr.mxu0 0.0
      %241 = vmatpush1.msra.mxu0 0.0
      %242 = vmatprep.subr.mxu0 0.0
      %243 = vmatpush1.msra.mxu0 0.0
      %244 = vmatprep.subr.mxu0 %v209
      %245 = vmatpush1.msra.mxu0 %v208
      %246 = vmatprep.subr.mxu0 %v201
      %247 = vmatpush1.msra.mxu0 %v200
      %248 = vmatprep.subr.mxu0 %v193
      %249 = vmatpush1.msra.mxu0 %v192
      %250 = vmatprep.subr.mxu0 %v185
      %251 = vmatpush1.msra.mxu0 %v184
      %252 = vmatprep.subr.mxu0 0.0
      %253 = vmatpush2.msra.mxu0 0.0
      %254 = vmatprep.subr.mxu0 0.0
      %255 = vmatpush2.msra.mxu0 0.0
      %256 = vmatprep.subr.mxu0 0.0
      %257 = vmatpush2.msra.mxu0 0.0
      %258 = vmatprep.subr.mxu0 0.0
      %259 = vmatpush2.msra.mxu0 0.0
      %260 = vmatprep.subr.mxu0 0.0
      %261 = vmatpush2.msra.mxu0 0.0
      %262 = vmatprep.subr.mxu0 0.0
      %263 = vmatpush2.msra.mxu0 0.0
      %264 = vmatprep.subr.mxu0 0.0
      %265 = vmatpush2.msra.mxu0 0.0
      %266 = vmatprep.subr.mxu0 0.0
      %267 = vmatpush2.msra.mxu0 0.0
      %268 = vmatprep.subr.mxu0 0.0
      %269 = vmatpush2.msra.mxu0 0.0
      %270 = vmatprep.subr.mxu0 0.0
      %271 = vmatpush2.msra.mxu0 0.0
      %272 = vmatprep.subr.mxu0 0.0
      %273 = vmatpush2.msra.mxu0 0.0
      %274 = vmatprep.subr.mxu0 0.0
      %275 = vmatpush2.msra.mxu0 0.0
      %276 = vmatprep.subr.mxu0 0.0
      %277 = vmatpush2.msra.mxu0 0.0
      %278 = vmatprep.subr.mxu0 0.0
      %279 = vmatpush2.msra.mxu0 0.0
      %280 = vmatprep.subr.mxu0 0.0
      %281 = vmatpush2.msra.mxu0 0.0
      %282 = vmatprep.subr.mxu0 0.0
      %283 = vmatpush2.msra.mxu0 0.0
      %284 = vmatprep.mubr.f32.mxu0 0.0
      %285 = vmatmul.mubr.f32.gmra.mxu0 %v218
      %v286 = vpop.f32.mrf.mxu0
      %v287 = vadd.f32 0.0, %v286
      %v288 = vpop.f32.mrf.mxu0
      %v289 = vadd.f32 0.0, %v288
      %290 = vdwg.mxu0
      %291 = vmatprep.subr.mxu0 0.0
      %292 = vmatpush1.msra.mxu0 0.0
      %293 = vmatprep.subr.mxu0 0.0
      %294 = vmatpush1.msra.mxu0 0.0
      %295 = vmatprep.subr.mxu0 0.0
      %296 = vmatpush1.msra.mxu0 0.0
      %297 = vmatprep.subr.mxu0 0.0
      %298 = vmatpush1.msra.mxu0 0.0
      %299 = vmatprep.subr.mxu0 0.0
      %300 = vmatpush1.msra.mxu0 0.0
      %301 = vmatprep.subr.mxu0 0.0
      %302 = vmatpush1.msra.mxu0 0.0
      %303 = vmatprep.subr.mxu0 0.0
      %304 = vmatpush1.msra.mxu0 0.0
      %305 = vmatprep.subr.mxu0 0.0
      %306 = vmatpush1.msra.mxu0 0.0
      %307 = vmatprep.subr.mxu0 0.0
      %308 = vmatpush1.msra.mxu0 0.0
      %309 = vmatprep.subr.mxu0 0.0
      %310 = vmatpush1.msra.mxu0 0.0
      %311 = vmatprep.subr.mxu0 0.0
      %312 = vmatpush1.msra.mxu0 0.0
      %313 = vmatprep.subr.mxu0 0.0
      %314 = vmatpush1.msra.mxu0 0.0
      %315 = vmatprep.subr.mxu0 %v211
      %316 = vmatpush1.msra.mxu0 %v210
      %317 = vmatprep.subr.mxu0 %v203
      %318 = vmatpush1.msra.mxu0 %v202
      %319 = vmatprep.subr.mxu0 %v195
      %320 = vmatpush1.msra.mxu0 %v194
      %321 = vmatprep.subr.mxu0 %v187
      %322 = vmatpush1.msra.mxu0 %v186
      %323 = vmatprep.subr.mxu0 0.0
      %324 = vmatpush2.msra.mxu0 0.0
      %325 = vmatprep.subr.mxu0 0.0
      %326 = vmatpush2.msra.mxu0 0.0
      %327 = vmatprep.subr.mxu0 0.0
      %328 = vmatpush2.msra.mxu0 0.0
      %329 = vmatprep.subr.mxu0 0.0
      %330 = vmatpush2.msra.mxu0 0.0
      %331 = vmatprep.subr.mxu0 0.0
      %332 = vmatpush2.msra.mxu0 0.0
      %333 = vmatprep.subr.mxu0 0.0
      %334 = vmatpush2.msra.mxu0 0.0
      %335 = vmatprep.subr.mxu0 0.0
      %336 = vmatpush2.msra.mxu0 0.0
      %337 = vmatprep.subr.mxu0 0.0
      %338 = vmatpush2.msra.mxu0 0.0
      %339 = vmatprep.subr.mxu0 0.0
      %340 = vmatpush2.msra.mxu0 0.0
      %341 = vmatprep.subr.mxu0 0.0
      %342 = vmatpush2.msra.mxu0 0.0
      %343 = vmatprep.subr.mxu0 0.0
      %344 = vmatpush2.msra.mxu0 0.0
      %345 = vmatprep.subr.mxu0 0.0
      %346 = vmatpush2.msra.mxu0 0.0
      %347 = vmatprep.subr.mxu0 0.0
      %348 = vmatpush2.msra.mxu0 0.0
      %349 = vmatprep.subr.mxu0 0.0
      %350 = vmatpush2.msra.mxu0 0.0
      %351 = vmatprep.subr.mxu0 0.0
      %352 = vmatpush2.msra.mxu0 0.0
      %353 = vmatprep.subr.mxu0 0.0
      %354 = vmatpush2.msra.mxu0 0.0
      %355 = vmatprep.mubr.f32.mxu0 0.0
      %356 = vmatmul.mubr.f32.gmra.mxu0 %v218
      %v357 = vpop.f32.mrf.mxu0
      %v358 = vadd.f32 0.0, %v357
      %v359 = vpop.f32.mrf.mxu0
      %v360 = vadd.f32 0.0, %v359
      %361 = vdwg.mxu0
      %362 = vmatprep.subr.mxu0 0.0
      %363 = vmatpush1.msra.mxu0 0.0
      %364 = vmatprep.subr.mxu0 0.0
      %365 = vmatpush1.msra.mxu0 0.0
      %366 = vmatprep.subr.mxu0 0.0
      %367 = vmatpush1.msra.mxu0 0.0
      %368 = vmatprep.subr.mxu0 0.0
      %369 = vmatpush1.msra.mxu0 0.0
      %370 = vmatprep.subr.mxu0 0.0
      %371 = vmatpush1.msra.mxu0 0.0
      %372 = vmatprep.subr.mxu0 0.0
      %373 = vmatpush1.msra.mxu0 0.0
      %374 = vmatprep.subr.mxu0 0.0
      %375 = vmatpush1.msra.mxu0 0.0
      %376 = vmatprep.subr.mxu0 0.0
      %377 = vmatpush1.msra.mxu0 0.0
      %378 = vmatprep.subr.mxu0 0.0
      %379 = vmatpush1.msra.mxu0 0.0
      %380 = vmatprep.subr.mxu0 0.0
      %381 = vmatpush1.msra.mxu0 0.0
      %382 = vmatprep.subr.mxu0 0.0
      %383 = vmatpush1.msra.mxu0 0.0
      %384 = vmatprep.subr.mxu0 0.0
      %385 = vmatpush1.msra.mxu0 0.0
      %386 = vmatprep.subr.mxu0 %v213
      %387 = vmatpush1.msra.mxu0 %v212
      %388 = vmatprep.subr.mxu0 %v205
      %389 = vmatpush1.msra.mxu0 %v204
      %390 = vmatprep.subr.mxu0 %v197
      %391 = vmatpush1.msra.mxu0 %v196
      %392 = vmatprep.subr.mxu0 %v189
      %393 = vmatpush1.msra.mxu0 %v188
      %394 = vmatprep.subr.mxu0 0.0
      %395 = vmatpush2.msra.mxu0 0.0
      %396 = vmatprep.subr.mxu0 0.0
      %397 = vmatpush2.msra.mxu0 0.0
      %398 = vmatprep.subr.mxu0 0.0
      %399 = vmatpush2.msra.mxu0 0.0
      %400 = vmatprep.subr.mxu0 0.0
      %401 = vmatpush2.msra.mxu0 0.0
      %402 = vmatprep.subr.mxu0 0.0
      %403 = vmatpush2.msra.mxu0 0.0
      %404 = vmatprep.subr.mxu0 0.0
      %405 = vmatpush2.msra.mxu0 0.0
      %406 = vmatprep.subr.mxu0 0.0
      %407 = vmatpush2.msra.mxu0 0.0
      %408 = vmatprep.subr.mxu0 0.0
      %409 = vmatpush2.msra.mxu0 0.0
      %410 = vmatprep.subr.mxu0 0.0
      %411 = vmatpush2.msra.mxu0 0.0
      %412 = vmatprep.subr.mxu0 0.0
      %413 = vmatpush2.msra.mxu0 0.0
      %414 = vmatprep.subr.mxu0 0.0
      %415 = vmatpush2.msra.mxu0 0.0
      %416 = vmatprep.subr.mxu0 0.0
      %417 = vmatpush2.msra.mxu0 0.0
      %418 = vmatprep.subr.mxu0 0.0
      %419 = vmatpush2.msra.mxu0 0.0
      %420 = vmatprep.subr.mxu0 0.0
      %421 = vmatpush2.msra.mxu0 0.0
      %422 = vmatprep.subr.mxu0 0.0
      %423 = vmatpush2.msra.mxu0 0.0
      %424 = vmatprep.subr.mxu0 0.0
      %425 = vmatpush2.msra.mxu0 0.0
      %426 = vmatprep.mubr.f32.mxu0 0.0
      %427 = vmatmul.mubr.f32.gmra.mxu0 %v218
      %v428 = vpop.f32.mrf.mxu0
      %v429 = vadd.f32 0.0, %v428
      %v430 = vpop.f32.mrf.mxu0
      %v431 = vadd.f32 0.0, %v430
      %432 = vdwg.mxu0
      %433 = vmatprep.subr.mxu0 0.0
      %434 = vmatpush1.msra.mxu0 0.0
      %435 = vmatprep.subr.mxu0 0.0
      %436 = vmatpush1.msra.mxu0 0.0
      %437 = vmatprep.subr.mxu0 0.0
      %438 = vmatpush1.msra.mxu0 0.0
      %439 = vmatprep.subr.mxu0 0.0
      %440 = vmatpush1.msra.mxu0 0.0
      %441 = vmatprep.subr.mxu0 0.0
      %442 = vmatpush1.msra.mxu0 0.0
      %443 = vmatprep.subr.mxu0 0.0
      %444 = vmatpush1.msra.mxu0 0.0
      %445 = vmatprep.subr.mxu0 0.0
      %446 = vmatpush1.msra.mxu0 0.0
      %447 = vmatprep.subr.mxu0 0.0
      %448 = vmatpush1.msra.mxu0 0.0
      %449 = vmatprep.subr.mxu0 0.0
      %450 = vmatpush1.msra.mxu0 0.0
      %451 = vmatprep.subr.mxu0 0.0
      %452 = vmatpush1.msra.mxu0 0.0
      %453 = vmatprep.subr.mxu0 0.0
      %454 = vmatpush1.msra.mxu0 0.0
      %455 = vmatprep.subr.mxu0 0.0
      %456 = vmatpush1.msra.mxu0 0.0
      %457 = vmatprep.subr.mxu0 %v215
      %458 = vmatpush1.msra.mxu0 %v214
      %459 = vmatprep.subr.mxu0 %v207
      %460 = vmatpush1.msra.mxu0 %v206
      %461 = vmatprep.subr.mxu0 %v199
      %462 = vmatpush1.msra.mxu0 %v198
      %463 = vmatprep.subr.mxu0 %v191
      %464 = vmatpush1.msra.mxu0 %v190
      %465 = vmatprep.subr.mxu0 0.0
      %466 = vmatpush2.msra.mxu0 0.0
      %467 = vmatprep.subr.mxu0 0.0
      %468 = vmatpush2.msra.mxu0 0.0
      %469 = vmatprep.subr.mxu0 0.0
      %470 = vmatpush2.msra.mxu0 0.0
      %471 = vmatprep.subr.mxu0 0.0
      %472 = vmatpush2.msra.mxu0 0.0
      %473 = vmatprep.subr.mxu0 0.0
      %474 = vmatpush2.msra.mxu0 0.0
      %475 = vmatprep.subr.mxu0 0.0
      %476 = vmatpush2.msra.mxu0 0.0
      %477 = vmatprep.subr.mxu0 0.0
      %478 = vmatpush2.msra.mxu0 0.0
      %479 = vmatprep.subr.mxu0 0.0
      %480 = vmatpush2.msra.mxu0 0.0
      %481 = vmatprep.subr.mxu0 0.0
      %482 = vmatpush2.msra.mxu0 0.0
      %483 = vmatprep.subr.mxu0 0.0
      %484 = vmatpush2.msra.mxu0 0.0
      %485 = vmatprep.subr.mxu0 0.0
      %486 = vmatpush2.msra.mxu0 0.0
      %487 = vmatprep.subr.mxu0 0.0
      %488 = vmatpush2.msra.mxu0 0.0
      %489 = vmatprep.subr.mxu0 0.0
      %490 = vmatpush2.msra.mxu0 0.0
      %491 = vmatprep.subr.mxu0 0.0
      %492 = vmatpush2.msra.mxu0 0.0
      %493 = vmatprep.subr.mxu0 0.0
      %494 = vmatpush2.msra.mxu0 0.0
      %495 = vmatprep.subr.mxu0 0.0
      %496 = vmatpush2.msra.mxu0 0.0
      %497 = vmatprep.mubr.f32.mxu0 0.0
      %498 = vmatmul.mubr.f32.gmra.mxu0 %v218
      %v499 = vpop.f32.mrf.mxu0
      %v500 = vadd.f32 0.0, %v499
      %v501 = vpop.f32.mrf.mxu0
      %v502 = vadd.f32 0.0, %v501
      %503 = vdwg.mxu0
      %v512 = vcombine.low %v287, %v289
      %v513 = vcombine.low %v358, %v360
      %v514 = vcombine.low %v429, %v431
      %v515 = vcombine.low %v500, %v502
      %520 = vst [vmem:[%s181] sm:$0xff] %v512
      %521 = vst [vmem:[%s181 + $0x8] sm:$0xff] %v513
      %522 = vst [vmem:[%s181 + $0x10] sm:$0xff] %v514
      %523 = vst [vmem:[%s181 + $0x18] sm:$0xff] %v515
      %s524 = smul.u32 8, %s18
      %p525 = scmp.lt.s32.totalorder %s17, 1
      %s526 = scalar_select %p525, %s17, 1
      %p527 = scmp.lt.s32.totalorder %s524, 7
      %s528 = scalar_select %p527, %s524, 7
      %s529 = smul.addr %s526, 8
      %s530 = sadd.s32 %s528, %s529
      %s531 = smul.addr %s530, 4
      %s532 = scalar_lea.vmem %s2, %s531
      // Predicated region
      $region29: #{channel_agnostic_transformer_forward.1} parent=27 // pred_check
        %p533 = pneg %p94
      $region30: #{channel_agnostic_transformer_forward.1} parent=27 // pred_check_branch
        %535 = sbr.rel (%p533) target = $region32
      $region31: #{channel_agnostic_transformer_forward.1} parent=27 // pred_region
        %s536 = smul.u32 8, %s18
      $region32: #{channel_agnostic_transformer_forward.1} parent=27 // pred_fallthru
        _
    $region28: #{channel_agnostic_transformer_forward.1} parent=5 // pred_fallthru
      _
    %p537 = scmp.le.s32.totalorder 2, %s8
    // Predicated region
    $region33: #{channel_agnostic_transformer_forward.1} parent=5 // pred_check
      %p538 = pneg %p537
    $region34: #{channel_agnostic_transformer_forward.1} parent=5 // pred_check_branch
      %540 = sbr.rel (%p538) target = $region36
    $region35: #{channel_agnostic_transformer_forward.1} parent=5 // pred_region
      %s541 = ssub.s32 %s8, 2
      // Predicated region
      $region37: #{channel_agnostic_transformer_forward.1} parent=35 // pred_check
        %p542 = pneg %p100
      $region38: #{channel_agnostic_transformer_forward.1} parent=35 // pred_check_branch
        %544 = sbr.rel (%p542) target = $region40
      $region39: #{channel_agnostic_transformer_forward.1} parent=35 // pred_region
        %s545 = smul.u32 8, %s20
        %p546 = scmp.lt.s32.totalorder %s19, 1
        %s547 = scalar_select %p546, %s19, 1
        %p548 = scmp.lt.s32.totalorder %s545, 7
        %s549 = scalar_select %p548, %s545, 7
        %s550 = smul.addr %s547, 8
        %s551 = sadd.s32 %s549, %s550
        %s552 = smul.addr %s551, 4
        %s553 = scalar_lea.vmem %s2, %s552
      $region40: #{channel_agnostic_transformer_forward.1} parent=35 // pred_fallthru
        _
    $region36: #{channel_agnostic_transformer_forward.1} parent=5 // pred_fallthru
      _
  $region6: #{channel_agnostic_transformer_forward.1} parent=0 // loop_footer
    %s12 = sadd.s32 1, %s8
  $region7: #{channel_agnostic_transformer_forward.1} parent=0 // loop_footer_branch
    %7 = sbr.rel target = $region3
  $region8: #{channel_agnostic_transformer_forward.1} parent=0 // loop_exit
    _

</llo_original>
